<compile_context>
chip_gen: v7x
topology: tpu7x:2x2x1
jax: 0.10.0
libtpu: 0.0.40
codegen_flags: <defaults>
</compile_context>

<pallas_src>
import jax
import jax.numpy as jnp
from jax.experimental import pallas as pl
from jax.experimental.pallas import tpu as pltpu


def _tuple_2(s):
    if isinstance(s, (tuple, list)):
        return tuple(s)
    return (s, s)


def _round_up(x, m):
    return ((x + m - 1) // m) * m


def _vmem_capacity_bytes():
    """Physical VMEM per TensorCore, from the device kind (conservative default)."""
    try:
        kind = jax.devices()[0].device_kind.lower()
    except Exception:
        kind = ""
    if "v7" in kind:
        return 64 * 1024 * 1024
    return 128 * 1024 * 1024   # v5e / v6e (and a safe default elsewhere)


# ----------------------------------------------------------------------------
# spa-linear (spatial mean folded into the weight) + layer_norm over channels.
# Produces one lane-dense (rows, c_pad) f32 slab built in registers.
# ----------------------------------------------------------------------------
def _spa_ln_rows(x_refs, w_refs, c_pad, channels):
    cols = []
    for x_ref, w_ref in zip(x_refs, w_refs):
        x = x_ref[...].astype(jnp.float32)          # native dtype in, upcast in-kernel
        w = w_ref[...]                              # (1, HW_i) f32, broadcast over C
        # spa Linear + spatial mean in one reduction (w already has +1/hw folded
        # in; the spa bias is a per-sample constant that LN over C cancels).
        s = jnp.sum(x * w, axis=-1)                 # (rows, C_i)
        mu = jnp.mean(s, axis=-1, keepdims=True)
        var = jnp.mean((s - mu) ** 2, axis=-1, keepdims=True)
        cols.append((s - mu) * jax.lax.rsqrt(var + 1e-5))
    pad = c_pad - sum(channels)
    if pad:
        cols.append(jnp.zeros((cols[0].shape[0], pad), jnp.float32))
    return jnp.concatenate(cols, axis=-1)           # (rows, c_pad), zero tail


# ----------------------------------------------------------------------------
# Fused path (grid == (1,)): spa+LN + BatchNorm(batch stats) + FC in one kernel.
# Used when everything fits comfortably in VMEM -> no z HBM round trip.
# ----------------------------------------------------------------------------
def _make_fused_kernel(channels, n_in, c_pad, use_bf16_matmul):
    def kernel(*refs):
        x_refs = refs[:n_in]
        w_refs = refs[n_in:2 * n_in]
        g_ref, beta_ref, wfc_ref, bfc_ref, o_ref = refs[2 * n_in:2 * n_in + 5]
        z = _spa_ln_rows(x_refs, w_refs, c_pad, channels)       # (N, c_pad)
        bmu = jnp.mean(z, axis=0, keepdims=True)
        bvar = jnp.mean((z - bmu) ** 2, axis=0, keepdims=True)  # biased (train mode)
        zb = (z - bmu) * jax.lax.rsqrt(bvar + 1e-5) * g_ref[...] + beta_ref[...]
        wfc = wfc_ref[...]
        if use_bf16_matmul:
            zb = zb.astype(jnp.bfloat16)
            wfc = wfc.astype(jnp.bfloat16)
        o_ref[...] = (
            jnp.dot(zb, wfc, preferred_element_type=jnp.float32) + bfc_ref[...]
        )
    return kernel


def fused_forward(xs_flat, w_effs, gamma, beta, wfc, bfc, channels, c_pad, out_pad,
                  vmem_limit, use_bf16_matmul):
    n = xs_flat[0].shape[0]
    n_in = len(xs_flat)
    vmem = pl.BlockSpec(memory_space=pltpu.MemorySpace.VMEM)
    return pl.pallas_call(
        _make_fused_kernel(tuple(channels), n_in, c_pad, use_bf16_matmul),
        out_shape=jax.ShapeDtypeStruct((n, out_pad), jnp.float32),
        in_specs=[vmem] * (2 * n_in + 4),
        out_specs=vmem,
        compiler_params=pltpu.CompilerParams(vmem_limit_bytes=vmem_limit),
    )(*xs_flat, *w_effs, gamma, beta, wfc, bfc)


# ----------------------------------------------------------------------------
# Split path, kernel 1: spa+LN tiled over the batch dim (double-buffered DMA,
# "parallel" axis), single full-width store of the (bn, c_pad) tile.
# ----------------------------------------------------------------------------
def _make_spa_ln_kernel(channels, n_in, c_pad):
    def kernel(*refs):
        x_refs = refs[:n_in]
        w_refs = refs[n_in:2 * n_in]
        o_ref = refs[2 * n_in]
        o_ref[...] = _spa_ln_rows(x_refs, w_refs, c_pad, channels)
    return kernel


def fused_spa_ln(xs_flat, w_effs, channels, c_pad, k1_budget, vmem_limit, vmem_cap,
                 is_v7):
    n = xs_flat[0].shape[0]
    n_in = len(xs_flat)

    # Per-sample VMEM cost incl. double-buffering of inputs AND the output slab.
    in_bytes_per_sample = sum(x.shape[1] * x.shape[2] * x.dtype.itemsize
                              for x in xs_flat)
    per_sample = 2 * (in_bytes_per_sample + c_pad * 4)
    fixed = 2 * 4 * sum(x.shape[2] for x in xs_flat)    # (1, HW_i) weight buffers

    bn = max((k1_budget - fixed) // max(per_sample, 1), 0)
    if bn >= n:
        bn = n
    else:
        bn = min(max(8, (bn // 8) * 8), n)
    if is_v7 and n >= 16:
        # keep >= 2 grid steps so both v7x TensorCores get work ("parallel" axis)
        bn = min(bn, max(8, _round_up((n + 1) // 2, 8)))

    # TODO(synk): when a single sample exceeds the budget (huge HW_i) add an HW
    # grid axis ("arbitrary") with a partial-sum scratch instead of inflating
    # the VMEM limit here.
    vmem_limit = min(max(vmem_limit, fixed + bn * per_sample + (2 << 20)),
                     vmem_cap - (8 << 20))

    grid = (pl.cdiv(n, bn),)
    in_specs = [pl.BlockSpec((bn, x.shape[1], x.shape[2]), lambda b: (b, 0, 0))
                for x in xs_flat]
    in_specs += [pl.BlockSpec((1, w.shape[1]), lambda b: (0, 0)) for w in w_effs]

    return pl.pallas_call(
        _make_spa_ln_kernel(tuple(channels), n_in, c_pad),
        out_shape=jax.ShapeDtypeStruct((n, c_pad), jnp.float32),
        grid=grid,
        in_specs=in_specs,
        out_specs=pl.BlockSpec((bn, c_pad), lambda b: (b, 0)),
        compiler_params=pltpu.CompilerParams(
            dimension_semantics=("parallel",),
            vmem_limit_bytes=vmem_limit,
        ),
    )(*xs_flat, *w_effs)


# ----------------------------------------------------------------------------
# Split path, kernel 2a: BatchNorm batch statistics, gridded over N
# (resident (1, c_pad) accumulators, "arbitrary" axis, masked partial tile).
# ----------------------------------------------------------------------------
def _make_bn_stats_kernel(n_total, tn):
    def kernel(z_ref, sum_ref, ssq_ref):
        i = pl.program_id(0)

        @pl.when(i == 0)
        def _():
            sum_ref[...] = jnp.zeros_like(sum_ref)
            ssq_ref[...] = jnp.zeros_like(ssq_ref)

        z = z_ref[...]
        row = i * tn + jax.lax.broadcasted_iota(jnp.int32, z.shape, 0)
        zv = jnp.where(row < n_total, z, 0.0)        # mask out-of-range rows
        sum_ref[...] += jnp.sum(zv, axis=0, keepdims=True)
        ssq_ref[...] += jnp.sum(zv * zv, axis=0, keepdims=True)
    return kernel


def bn_stats(z, c_pad, tn, vmem_limit):
    n = z.shape[0]
    return pl.pallas_call(
        _make_bn_stats_kernel(n, tn),
        out_shape=(jax.ShapeDtypeStruct((1, c_pad), jnp.float32),
                   jax.ShapeDtypeStruct((1, c_pad), jnp.float32)),
        grid=(pl.cdiv(n, tn),),
        in_specs=[pl.BlockSpec((tn, c_pad), lambda i: (i, 0))],
        out_specs=(pl.BlockSpec((1, c_pad), lambda i: (0, 0)),
                   pl.BlockSpec((1, c_pad), lambda i: (0, 0))),
        compiler_params=pltpu.CompilerParams(
            dimension_semantics=("arbitrary",),
            vmem_limit_bytes=vmem_limit,
        ),
    )(z)


# ----------------------------------------------------------------------------
# Split path, kernel 2b: BN normalize + final Linear on the MXU, gridded over N.
# ----------------------------------------------------------------------------
def _make_bn_fc_kernel(n_total, use_bf16_matmul):
    inv_n = 1.0 / float(n_total)

    def kernel(z_ref, sum_ref, ssq_ref, g_ref, beta_ref, wfc_ref, bfc_ref, o_ref):
        mu = sum_ref[...] * inv_n
        var = ssq_ref[...] * inv_n - mu * mu          # biased (train mode)
        zb = (z_ref[...] - mu) * jax.lax.rsqrt(var + 1e-5) * g_ref[...] + beta_ref[...]
        wfc = wfc_ref[...]
        if use_bf16_matmul:
            zb = zb.astype(jnp.bfloat16)
            wfc = wfc.astype(jnp.bfloat16)
        o_ref[...] = (
            jnp.dot(zb, wfc, preferred_element_type=jnp.float32) + bfc_ref[...]
        )
    return kernel


def bn_fc(z, sums, ssqs, gamma, beta, wfc, bfc, tn, out_pad, vmem_limit,
          use_bf16_matmul):
    n, c_pad = z.shape
    return pl.pallas_call(
        _make_bn_fc_kernel(n, use_bf16_matmul),
        out_shape=jax.ShapeDtypeStruct((n, out_pad), jnp.float32),
        grid=(pl.cdiv(n, tn),),
        in_specs=[
            pl.BlockSpec((tn, c_pad), lambda i: (i, 0)),
            pl.BlockSpec((1, c_pad), lambda i: (0, 0)),
            pl.BlockSpec((1, c_pad), lambda i: (0, 0)),
            pl.BlockSpec((1, c_pad), lambda i: (0, 0)),
            pl.BlockSpec((1, c_pad), lambda i: (0, 0)),
            pl.BlockSpec((c_pad, out_pad), lambda i: (0, 0)),
            pl.BlockSpec((1, out_pad), lambda i: (0, 0)),
        ],
        out_specs=pl.BlockSpec((tn, out_pad), lambda i: (i, 0)),
        compiler_params=pltpu.CompilerParams(
            dimension_semantics=("parallel",),
            vmem_limit_bytes=vmem_limit,
        ),
    )(z, sums, ssqs, gamma, beta, wfc, bfc)


# ----------------------------------------------------------------------------
# ExC module: deterministic parameter init + forward using the kernels above.
# ----------------------------------------------------------------------------
class ExCPallas:
    def __init__(self, in_channels, out_channels, sizes, key, use_bf16_matmul=False):
        self.in_channels = list(in_channels)
        self.out_channels = out_channels
        self.use_bf16_matmul = use_bf16_matmul
        keys = jax.random.split(key, 2 * len(sizes) + 2)

        # spa linears: nn.Linear(h*w, 1) -> weight (1, h*w), bias (1,).
        # Spatial mean folded into the weight; the bias cancels under LN.
        self.spa_w_eff = []
        for i, s in enumerate(sizes):
            h, w = _tuple_2(s)
            hw = h * w
            bound = 1.0 / (hw ** 0.5)
            w_spa = jax.random.uniform(keys[2 * i], (1, hw), jnp.float32, -bound, bound)
            _b_spa = jax.random.uniform(keys[2 * i + 1], (1,), jnp.float32, -bound, bound)
            self.spa_w_eff.append(w_spa + 1.0 / hw)

        c = sum(self.in_channels)
        self.c_sum = c
        self.c_pad = _round_up(c, 128)
        self.out_pad = _round_up(out_channels, 128)

        # BatchNorm1d(c): gamma=1, beta=0 (PyTorch default), lane-padded.
        self.bn_gamma = jnp.pad(
            jnp.ones((c,), jnp.float32), (0, self.c_pad - c), constant_values=1.0
        ).reshape(1, self.c_pad)
        self.bn_beta = jnp.zeros((1, self.c_pad), jnp.float32)

        # fc: nn.Linear(c, out_channels); stored transposed, zero-padded
        # (zero rows/cols make the padded z lanes contribute nothing).
        bound = 1.0 / (c ** 0.5)
        w_fc = jax.random.uniform(keys[-2], (c, out_channels), jnp.float32, -bound, bound)
        b_fc = jax.random.uniform(keys[-1], (out_channels,), jnp.float32, -bound, bound)
        self.w_fc = jnp.pad(
            w_fc, ((0, self.c_pad - c), (0, self.out_pad - out_channels))
        )
        self.b_fc = jnp.pad(b_fc, (0, self.out_pad - out_channels)).reshape(
            1, self.out_pad
        )

        # Generation-aware VMEM budgets.
        self.vmem_cap = _vmem_capacity_bytes()
        self.is_v7 = self.vmem_cap <= 64 * 1024 * 1024
        if self.is_v7:
            self.vmem_limit = 48 * 1024 * 1024
            self.k1_budget = 24 * 1024 * 1024     # total k1 buffers (incl. x2 dbuf)
            self.fused_budget = 36 * 1024 * 1024
        else:  # v5e / v6e: 128 MiB physical VMEM
            self.vmem_limit = 100 * 1024 * 1024
            self.k1_budget = 32 * 1024 * 1024
            self.fused_budget = 72 * 1024 * 1024

    def _k2_tile(self, n):
        fixed = 4 * (self.c_pad * self.out_pad + 4 * self.c_pad + 2 * self.out_pad)
        per_row = 2 * 4 * (self.c_pad + self.out_pad)   # double-buffered z + out rows
        tn = max((self.k1_budget - fixed) // per_row, 8)
        tn = max(8, (tn // 8) * 8)
        return max(8, min(tn, _round_up(n, 8), 1024))

    def __call__(self, xs, force_split=False):
        # Keep the native dtype (bf16 stays bf16); the kernels upcast per tile.
        xs_flat = [x.reshape(x.shape[0], x.shape[1], x.shape[2] * x.shape[3])
                   for x in xs]
        n = xs_flat[0].shape[0]

        # TODO(synk): BatchNorm1d running_mean/running_var updates (stateful
        # side effect) are not modeled; forward uses batch stats as in training
        # mode, matching the module's default-mode forward pass.

        in_bytes = sum(int(x.size) * x.dtype.itemsize for x in xs_flat)
        z_bytes = n * self.c_pad * 4
        w_bytes = 4 * (self.c_pad * self.out_pad + 3 * self.c_pad + self.out_pad
                       + sum(w.shape[1] for w in self.spa_w_eff))
        out_bytes = n * self.out_pad * 4
        fused_bytes = in_bytes + 3 * z_bytes + w_bytes + out_bytes

        if (not force_split) and fused_bytes <= self.fused_budget:
            out_pad = fused_forward(
                xs_flat, self.spa_w_eff, self.bn_gamma, self.bn_beta,
                self.w_fc, self.b_fc, self.in_channels, self.c_pad, self.out_pad,
                self.vmem_limit, self.use_bf16_matmul)
        else:
            z = fused_spa_ln(xs_flat, self.spa_w_eff, self.in_channels, self.c_pad,
                             self.k1_budget, self.vmem_limit, self.vmem_cap,
                             self.is_v7)
            tn = self._k2_tile(n)
            sums, ssqs = bn_stats(z, self.c_pad, tn, self.vmem_limit)
            out_pad = bn_fc(z, sums, ssqs, self.bn_gamma, self.bn_beta,
                            self.w_fc, self.b_fc, tn, self.out_pad,
                            self.vmem_limit, self.use_bf16_matmul)
        return out_pad[:, : self.out_channels]


if __name__ == "__main__":
    key = jax.random.PRNGKey(0)
    k_in0, k_in1, k_params = jax.random.split(key, 3)

    # Small shapes consistent with the module:
    #   in_channels=[4, 6], sizes=[16, 8]  ->  x0: (2,4,16,16), x1: (2,6,8,8)
    in_channels = [4, 6]
    sizes = [16, 8]
    out_channels = 10
    batch = 2

    x0 = jax.random.normal(k_in0, (batch, in_channels[0], 16, 16), jnp.float32)
    x1 = jax.random.normal(k_in1, (batch, in_channels[1], 8, 8), jnp.float32)

    model = ExCPallas(in_channels, out_channels, sizes, k_params)

    out_fused = model([x0, x1])                      # fused single-kernel path
    out_split = model([x0, x1], force_split=True)    # tiled split (3-kernel) path
    out_bf16 = model([x0.astype(jnp.bfloat16), x1.astype(jnp.bfloat16)])
    jax.block_until_ready((out_fused, out_split, out_bf16))

    assert out_fused.shape == (batch, out_channels)
    assert out_split.shape == (batch, out_channels)
    assert out_bf16.shape == (batch, out_channels)
    assert bool(jnp.all(jnp.isfinite(out_fused)))
    assert bool(jnp.all(jnp.isfinite(out_split)))
    assert bool(jnp.all(jnp.isfinite(out_bf16)))
    assert bool(jnp.allclose(out_fused, out_split, atol=1e-3, rtol=1e-3))
    print("KERNEL_OK")
</pallas_src>

<mosaic_0001>
module attributes {stable_mosaic.version = 11 : i64} {
  func.func @kernel(%arg0: memref<2x4x256xf32, #tpu.memory_space<vmem>>, %arg1: memref<2x6x64xf32, #tpu.memory_space<vmem>>, %arg2: memref<1x256xf32, #tpu.memory_space<vmem>>, %arg3: memref<1x64xf32, #tpu.memory_space<vmem>>, %arg4: memref<1x128xf32, #tpu.memory_space<vmem>>, %arg5: memref<1x128xf32, #tpu.memory_space<vmem>>, %arg6: memref<128x128xf32, #tpu.memory_space<vmem>>, %arg7: memref<1x128xf32, #tpu.memory_space<vmem>>, %arg8: memref<2x128xf32, #tpu.memory_space<vmem>>) attributes {dimension_semantics = [], scalar_prefetch = 0 : i64, scratch_operands = 0 : i64, tpu.core_type = #tpu.core_type<tc>} {
    %c0 = arith.constant 0 : index
    %c0_0 = arith.constant 0 : index
    %c0_1 = arith.constant 0 : index
    %0 = vector.load %arg0[%c0, %c0_0, %c0_1] : memref<2x4x256xf32, #tpu.memory_space<vmem>>, vector<2x4x256xf32>
    %c0_2 = arith.constant 0 : index
    %c0_3 = arith.constant 0 : index
    %1 = vector.load %arg2[%c0_2, %c0_3] : memref<1x256xf32, #tpu.memory_space<vmem>>, vector<1x256xf32>
    %2 = vector.shape_cast %1 : vector<1x256xf32> to vector<1x1x256xf32>
    %3 = vector.broadcast %2 : vector<1x1x256xf32> to vector<2x4x256xf32>
    %4 = arith.mulf %0, %3 : vector<2x4x256xf32>
    %cst = arith.constant dense<0.000000e+00> : vector<2x4xf32>
    %5 = vector.multi_reduction <add>, %4, %cst [2] : vector<2x4x256xf32> to vector<2x4xf32>
    %cst_4 = arith.constant dense<0.000000e+00> : vector<2xf32>
    %6 = vector.multi_reduction <add>, %5, %cst_4 [1] : vector<2x4xf32> to vector<2xf32>
    %7 = vector.shape_cast %6 : vector<2xf32> to vector<2x1xf32>
    %cst_5 = arith.constant 4.000000e+00 : f32
    %8 = vector.broadcast %cst_5 : f32 to vector<2x1xf32>
    %9 = arith.divf %7, %8 : vector<2x1xf32>
    %10 = vector.broadcast %9 : vector<2x1xf32> to vector<2x4xf32>
    %11 = arith.subf %5, %10 : vector<2x4xf32>
    %12 = arith.mulf %11, %11 : vector<2x4xf32>
    %cst_6 = arith.constant dense<0.000000e+00> : vector<2xf32>
    %13 = vector.multi_reduction <add>, %12, %cst_6 [1] : vector<2x4xf32> to vector<2xf32>
    %14 = vector.shape_cast %13 : vector<2xf32> to vector<2x1xf32>
    %cst_7 = arith.constant 4.000000e+00 : f32
    %15 = vector.broadcast %cst_7 : f32 to vector<2x1xf32>
    %16 = arith.divf %14, %15 : vector<2x1xf32>
    %17 = vector.broadcast %9 : vector<2x1xf32> to vector<2x4xf32>
    %18 = arith.subf %5, %17 : vector<2x4xf32>
    %cst_8 = arith.constant 9.99999974E-6 : f32
    %19 = vector.broadcast %cst_8 : f32 to vector<2x1xf32>
    %20 = arith.addf %16, %19 : vector<2x1xf32>
    %21 = math.rsqrt %20 : vector<2x1xf32>
    %22 = vector.broadcast %21 : vector<2x1xf32> to vector<2x4xf32>
    %23 = arith.mulf %18, %22 : vector<2x4xf32>
    %c0_9 = arith.constant 0 : index
    %c0_10 = arith.constant 0 : index
    %c0_11 = arith.constant 0 : index
    %24 = vector.load %arg1[%c0_9, %c0_10, %c0_11] : memref<2x6x64xf32, #tpu.memory_space<vmem>>, vector<2x6x64xf32>
    %c0_12 = arith.constant 0 : index
    %c0_13 = arith.constant 0 : index
    %25 = vector.load %arg3[%c0_12, %c0_13] : memref<1x64xf32, #tpu.memory_space<vmem>>, vector<1x64xf32>
    %26 = vector.shape_cast %25 : vector<1x64xf32> to vector<1x1x64xf32>
    %27 = vector.broadcast %26 : vector<1x1x64xf32> to vector<2x6x64xf32>
    %28 = arith.mulf %24, %27 : vector<2x6x64xf32>
    %cst_14 = arith.constant dense<0.000000e+00> : vector<2x6xf32>
    %29 = vector.multi_reduction <add>, %28, %cst_14 [2] : vector<2x6x64xf32> to vector<2x6xf32>
    %cst_15 = arith.constant dense<0.000000e+00> : vector<2xf32>
    %30 = vector.multi_reduction <add>, %29, %cst_15 [1] : vector<2x6xf32> to vector<2xf32>
    %31 = vector.shape_cast %30 : vector<2xf32> to vector<2x1xf32>
    %cst_16 = arith.constant 6.000000e+00 : f32
    %32 = vector.broadcast %cst_16 : f32 to vector<2x1xf32>
    %33 = arith.divf %31, %32 : vector<2x1xf32>
    %34 = vector.broadcast %33 : vector<2x1xf32> to vector<2x6xf32>
    %35 = arith.subf %29, %34 : vector<2x6xf32>
    %36 = arith.mulf %35, %35 : vector<2x6xf32>
    %cst_17 = arith.constant dense<0.000000e+00> : vector<2xf32>
    %37 = vector.multi_reduction <add>, %36, %cst_17 [1] : vector<2x6xf32> to vector<2xf32>
    %38 = vector.shape_cast %37 : vector<2xf32> to vector<2x1xf32>
    %cst_18 = arith.constant 6.000000e+00 : f32
    %39 = vector.broadcast %cst_18 : f32 to vector<2x1xf32>
    %40 = arith.divf %38, %39 : vector<2x1xf32>
    %41 = vector.broadcast %33 : vector<2x1xf32> to vector<2x6xf32>
    %42 = arith.subf %29, %41 : vector<2x6xf32>
    %cst_19 = arith.constant 9.99999974E-6 : f32
    %43 = vector.broadcast %cst_19 : f32 to vector<2x1xf32>
    %44 = arith.addf %40, %43 : vector<2x1xf32>
    %45 = math.rsqrt %44 : vector<2x1xf32>
    %46 = vector.broadcast %45 : vector<2x1xf32> to vector<2x6xf32>
    %47 = arith.mulf %42, %46 : vector<2x6xf32>
    %cst_20 = arith.constant 0.000000e+00 : f32
    %48 = vector.broadcast %cst_20 : f32 to vector<2x118xf32>
    %49 = tpu.concatenate %23, %47, %48 in 1 : vector<2x4xf32>, vector<2x6xf32>, vector<2x118xf32> -> vector<2x128xf32>
    %cst_21 = arith.constant dense<0.000000e+00> : vector<128xf32>
    %50 = vector.multi_reduction <add>, %49, %cst_21 [0] : vector<2x128xf32> to vector<128xf32>
    %51 = vector.shape_cast %50 : vector<128xf32> to vector<1x128xf32>
    %cst_22 = arith.constant 2.000000e+00 : f32
    %52 = vector.broadcast %cst_22 : f32 to vector<1x128xf32>
    %53 = arith.divf %51, %52 : vector<1x128xf32>
    %54 = vector.broadcast %53 : vector<1x128xf32> to vector<2x128xf32>
    %55 = arith.subf %49, %54 : vector<2x128xf32>
    %56 = arith.mulf %55, %55 : vector<2x128xf32>
    %cst_23 = arith.constant dense<0.000000e+00> : vector<128xf32>
    %57 = vector.multi_reduction <add>, %56, %cst_23 [0] : vector<2x128xf32> to vector<128xf32>
    %58 = vector.shape_cast %57 : vector<128xf32> to vector<1x128xf32>
    %cst_24 = arith.constant 2.000000e+00 : f32
    %59 = vector.broadcast %cst_24 : f32 to vector<1x128xf32>
    %60 = arith.divf %58, %59 : vector<1x128xf32>
    %61 = vector.broadcast %53 : vector<1x128xf32> to vector<2x128xf32>
    %62 = arith.subf %49, %61 : vector<2x128xf32>
    %cst_25 = arith.constant 9.99999974E-6 : f32
    %63 = vector.broadcast %cst_25 : f32 to vector<1x128xf32>
    %64 = arith.addf %60, %63 : vector<1x128xf32>
    %65 = math.rsqrt %64 : vector<1x128xf32>
    %66 = vector.broadcast %65 : vector<1x128xf32> to vector<2x128xf32>
    %67 = arith.mulf %62, %66 : vector<2x128xf32>
    %c0_26 = arith.constant 0 : index
    %c0_27 = arith.constant 0 : index
    %68 = vector.load %arg4[%c0_26, %c0_27] : memref<1x128xf32, #tpu.memory_space<vmem>>, vector<1x128xf32>
    %69 = vector.broadcast %68 : vector<1x128xf32> to vector<2x128xf32>
    %70 = arith.mulf %67, %69 : vector<2x128xf32>
    %c0_28 = arith.constant 0 : index
    %c0_29 = arith.constant 0 : index
    %71 = vector.load %arg5[%c0_28, %c0_29] : memref<1x128xf32, #tpu.memory_space<vmem>>, vector<1x128xf32>
    %72 = vector.broadcast %71 : vector<1x128xf32> to vector<2x128xf32>
    %73 = arith.addf %70, %72 : vector<2x128xf32>
    %c0_30 = arith.constant 0 : index
    %c0_31 = arith.constant 0 : index
    %74 = vector.load %arg6[%c0_30, %c0_31] : memref<128x128xf32, #tpu.memory_space<vmem>>, vector<128x128xf32>
    %cst_32 = arith.constant dense<0.000000e+00> : vector<2x128xf32>
    %75 = tpu.matmul %73, %74, %cst_32 {dimension_numbers = #tpu.dot_dimension_numbers<[1], [0], [0], [1], [0, 0, 1, 1], [], []>} : vector<2x128xf32>, vector<128x128xf32>, vector<2x128xf32> -> vector<2x128xf32>
    %c0_33 = arith.constant 0 : index
    %c0_34 = arith.constant 0 : index
    %76 = vector.load %arg7[%c0_33, %c0_34] : memref<1x128xf32, #tpu.memory_space<vmem>>, vector<1x128xf32>
    %77 = vector.broadcast %76 : vector<1x128xf32> to vector<2x128xf32>
    %78 = arith.addf %75, %77 : vector<2x128xf32>
    %c0_35 = arith.constant 0 : index
    %c0_36 = arith.constant 0 : index
    %79 = vector.load %arg8[%c0_35, %c0_36] : memref<2x128xf32, #tpu.memory_space<vmem>>, vector<2x128xf32>
    tpu.vector_store %arg8[%c0_35, %c0_36], %78 {strides = array<i32>} : memref<2x128xf32, #tpu.memory_space<vmem>>, vector<2x128xf32>,
    return
  }
}

</mosaic_0001>

<llo_original>
// kernel: tpu_custom_call.1
$region0: #{tpu_custom_call.1}
  #allocation0 [shape = 'u32[]', space=smem, size = 0x4, offset = 0x4, fixed_abs, tag = 'smem constant byte address 0x4 - core index']
  #allocation1 [shape = 'u32[144,128]{1,0:T(1,128)}', space=vmem, size = 0x12000, scoped, tag = 'internal scratch']
  %s0 = inlined_call_operand.hbm [shape: f32[2,4,256], index: 0, kind: input, shape index: {}]
  %s1 = inlined_call_operand.hbm [shape: f32[2,6,64], index: 1, kind: input, shape index: {}]
  %s2 = inlined_call_operand.hbm [shape: f32[1,256], index: 2, kind: input, shape index: {}]
  %s3 = inlined_call_operand.hbm [shape: f32[1,64], index: 3, kind: input, shape index: {}]
  %s4 = inlined_call_operand.hbm [shape: f32[1,128], index: 4, kind: input, shape index: {}]
  %s5 = inlined_call_operand.hbm [shape: f32[1,128], index: 5, kind: input, shape index: {}]
  %s6 = inlined_call_operand.hbm [shape: f32[128,128], index: 6, kind: input, shape index: {}]
  %s7 = inlined_call_operand.hbm [shape: f32[1,128], index: 7, kind: input, shape index: {}]
  %s8 = inlined_call_operand.hbm [shape: f32[2,128], index: 8, kind: output, shape index: {}]
  %s9 = sld [smem:[#allocation0]]
  $region74: #{tpu_custom_call.1} parent=0
    _
  %s11 = ssub.s32 1, %s9
  %s12 = scalar_select 0, %s11, %s9
  $region1: #{tpu_custom_call.1} parent=0
    #allocation2 [shape = 'u8[8192]{0}', space=vmem, size = 0x2000, scoped, tag = 'input window, operand 0, single buffered']
    #allocation3 [shape = 's32[1]{0}', space=sflag, size = 0x4, scoped, tag = 'scoped memory for tpu_custom_call.1']
    #allocation4 [shape = 's32[1]{0}', space=sflag, size = 0x4, scoped, tag = 'scoped memory for tpu_custom_call.1']
    #allocation5 [shape = 'u8[8192]{0}', space=vmem, size = 0x2000, scoped, tag = 'input window, operand 1, single buffered']
    #allocation6 [shape = 's32[1]{0}', space=sflag, size = 0x4, scoped, tag = 'scoped memory for tpu_custom_call.1']
    #allocation7 [shape = 'u8[1024]{0}', space=vmem, size = 0x400, scoped, tag = 'input window, operand 2, single buffered']
    #allocation8 [shape = 'u8[512]{0}', space=vmem, size = 0x400, scoped, tag = 'input window, operand 3, single buffered']
    #allocation9 [shape = 's32[1]{0}', space=sflag, size = 0x4, scoped, tag = 'scoped memory for tpu_custom_call.1']
    #allocation10 [shape = 'u8[512]{0}', space=vmem, size = 0x400, scoped, tag = 'input window, operand 4, single buffered']
    #allocation11 [shape = 'u8[512]{0}', space=vmem, size = 0x400, scoped, tag = 'input window, operand 5, single buffered']
    #allocation12 [shape = 's32[1]{0}', space=sflag, size = 0x4, scoped, tag = 'scoped memory for tpu_custom_call.1']
    #allocation13 [shape = 'u8[65536]{0}', space=vmem, size = 0x10000, scoped, tag = 'input window, operand 6, single buffered']
    #allocation14 [shape = 'u8[512]{0}', space=vmem, size = 0x400, scoped, tag = 'input window, operand 7, single buffered']
    #allocation15 [shape = 's32[1]{0}', space=sflag, size = 0x4, scoped, tag = 'scoped memory for tpu_custom_call.1']
    #allocation16 [shape = 'u8[1024]{0}', space=vmem, size = 0x400, scoped, tag = 'output window, operand 0, single buffered']
    %13 = vsyncpa [#allocation3], 0
    %14 = vsyncpa [#allocation6], 0
    %15 = vsyncpa [#allocation9], 0
    %16 = vsyncpa [#allocation12], 0
    %17 = vsyncpa [#allocation15], 0
    %18 = vsyncpa [#allocation4], 0
    // Predicated region
    $region2: #{tpu_custom_call.1} parent=1 // pred_check
      _
    $region3: #{tpu_custom_call.1} parent=1 // pred_check_branch
      %20 = sbr.rel (0) target = $region5
    $region4: #{tpu_custom_call.1} parent=1 // pred_region
      %s22 = ssub.s32 256, 256
      %23 = vsyncadd [#allocation3], %s22
      %s24 = sshll.u32 [#allocation2], 4
      %s25 = int_to_ptr.vmem [resolvable:$true] %s24
      %30 = dma.hbm_to_vmem [thread:$0]  %s0, 256, %s25, [#allocation3], 128, 128, 8
    $region5: #{tpu_custom_call.1} parent=1 // pred_fallthru
      _
    // Predicated region
    $region6: #{tpu_custom_call.1} parent=1 // pred_check
      _
    $region7: #{tpu_custom_call.1} parent=1 // pred_check_branch
      %32 = sbr.rel (0) target = $region9
    $region8: #{tpu_custom_call.1} parent=1 // pred_region
      %s34 = ssub.s32 256, 256
      %35 = vsyncadd [#allocation6], %s34
      %s36 = sshll.u32 [#allocation5], 4
      %s37 = int_to_ptr.vmem [resolvable:$true] %s36
      %42 = dma.hbm_to_vmem [thread:$0]  %s1, 256, %s37, [#allocation6], 128, 128, 8
    $region9: #{tpu_custom_call.1} parent=1 // pred_fallthru
      _
    // Predicated region
    $region10: #{tpu_custom_call.1} parent=1 // pred_check
      _
    $region11: #{tpu_custom_call.1} parent=1 // pred_check_branch
      %44 = sbr.rel (0) target = $region13
    $region12: #{tpu_custom_call.1} parent=1 // pred_region
      %s46 = ssub.s32 32, 32
      %47 = vsyncadd [#allocation6], %s46
      %s49 = sshll.u32 [#allocation7], 4
      %s50 = int_to_ptr.vmem [resolvable:$true] %s49
      %52 = dma.hbm_to_vmem [thread:$0]  %s2, 32, %s50, [#allocation6]
    $region13: #{tpu_custom_call.1} parent=1 // pred_fallthru
      _
    // Predicated region
    $region14: #{tpu_custom_call.1} parent=1 // pred_check
      _
    $region15: #{tpu_custom_call.1} parent=1 // pred_check_branch
      %54 = sbr.rel (0) target = $region17
    $region16: #{tpu_custom_call.1} parent=1 // pred_region
      %s56 = ssub.s32 16, 16
      %57 = vsyncadd [#allocation9], %s56
      %s59 = sshll.u32 [#allocation8], 4
      %s60 = int_to_ptr.vmem [resolvable:$true] %s59
      %62 = dma.hbm_to_vmem [thread:$0]  %s3, 16, %s60, [#allocation9]
    $region17: #{tpu_custom_call.1} parent=1 // pred_fallthru
      _
    // Predicated region
    $region18: #{tpu_custom_call.1} parent=1 // pred_check
      _
    $region19: #{tpu_custom_call.1} parent=1 // pred_check_branch
      %64 = sbr.rel (0) target = $region21
    $region20: #{tpu_custom_call.1} parent=1 // pred_region
      %s66 = ssub.s32 16, 16
      %67 = vsyncadd [#allocation9], %s66
      %s69 = sshll.u32 [#allocation10], 4
      %s70 = int_to_ptr.vmem [resolvable:$true] %s69
      %72 = dma.hbm_to_vmem [thread:$0]  %s4, 16, %s70, [#allocation9]
    $region21: #{tpu_custom_call.1} parent=1 // pred_fallthru
      _
    // Predicated region
    $region22: #{tpu_custom_call.1} parent=1 // pred_check
      _
    $region23: #{tpu_custom_call.1} parent=1 // pred_check_branch
      %74 = sbr.rel (0) target = $region25
    $region24: #{tpu_custom_call.1} parent=1 // pred_region
      %s76 = ssub.s32 16, 16
      %77 = vsyncadd [#allocation12], %s76
      %s79 = sshll.u32 [#allocation11], 4
      %s80 = int_to_ptr.vmem [resolvable:$true] %s79
      %82 = dma.hbm_to_vmem [thread:$0]  %s5, 16, %s80, [#allocation12]
    $region25: #{tpu_custom_call.1} parent=1 // pred_fallthru
      _
    // Predicated region
    $region26: #{tpu_custom_call.1} parent=1 // pred_check
      _
    $region27: #{tpu_custom_call.1} parent=1 // pred_check_branch
      %84 = sbr.rel (0) target = $region29
    $region28: #{tpu_custom_call.1} parent=1 // pred_region
      %s86 = ssub.s32 2048, 2048
      %87 = vsyncadd [#allocation12], %s86
      %s88 = sshll.u32 [#allocation13], 4
      %s89 = int_to_ptr.vmem [resolvable:$true] %s88
      %94 = dma.hbm_to_vmem [thread:$0]  %s6, 2048, %s89, [#allocation12], 128, 128, 8
    $region29: #{tpu_custom_call.1} parent=1 // pred_fallthru
      _
    // Predicated region
    $region30: #{tpu_custom_call.1} parent=1 // pred_check
      _
    $region31: #{tpu_custom_call.1} parent=1 // pred_check_branch
      %96 = sbr.rel (0) target = $region33
    $region32: #{tpu_custom_call.1} parent=1 // pred_region
      %s98 = ssub.s32 16, 16
      %99 = vsyncadd [#allocation15], %s98
      %s101 = sshll.u32 [#allocation14], 4
      %s102 = int_to_ptr.vmem [resolvable:$true] %s101
      %104 = dma.hbm_to_vmem [thread:$0]  %s7, 16, %s102, [#allocation15]
    $region33: #{tpu_custom_call.1} parent=1 // pred_fallthru
      _
    // Predicated region
    $region34: #{tpu_custom_call.1} parent=1 // pred_check
      _
    $region35: #{tpu_custom_call.1} parent=1 // pred_check_branch
      %106 = sbr.rel (0) target = $region37
    $region36: #{tpu_custom_call.1} parent=1 // pred_region
      %107 = dma.done [#allocation3], 256
    $region37: #{tpu_custom_call.1} parent=1 // pred_fallthru
      _
    // Predicated region
    $region38: #{tpu_custom_call.1} parent=1 // pred_check
      _
    $region39: #{tpu_custom_call.1} parent=1 // pred_check_branch
      %109 = sbr.rel (0) target = $region41
    $region40: #{tpu_custom_call.1} parent=1 // pred_region
      %110 = dma.done [#allocation6], 256
    $region41: #{tpu_custom_call.1} parent=1 // pred_fallthru
      _
    // Predicated region
    $region42: #{tpu_custom_call.1} parent=1 // pred_check
      _
    $region43: #{tpu_custom_call.1} parent=1 // pred_check_branch
      %112 = sbr.rel (0) target = $region45
    $region44: #{tpu_custom_call.1} parent=1 // pred_region
      %113 = dma.done [#allocation6], 32
    $region45: #{tpu_custom_call.1} parent=1 // pred_fallthru
      _
    // Predicated region
    $region46: #{tpu_custom_call.1} parent=1 // pred_check
      _
    $region47: #{tpu_custom_call.1} parent=1 // pred_check_branch
      %115 = sbr.rel (0) target = $region49
    $region48: #{tpu_custom_call.1} parent=1 // pred_region
      %116 = dma.done [#allocation9], 16
    $region49: #{tpu_custom_call.1} parent=1 // pred_fallthru
      _
    // Predicated region
    $region50: #{tpu_custom_call.1} parent=1 // pred_check
      _
    $region51: #{tpu_custom_call.1} parent=1 // pred_check_branch
      %118 = sbr.rel (0) target = $region53
    $region52: #{tpu_custom_call.1} parent=1 // pred_region
      %119 = dma.done [#allocation9], 16
    $region53: #{tpu_custom_call.1} parent=1 // pred_fallthru
      _
    // Predicated region
    $region54: #{tpu_custom_call.1} parent=1 // pred_check
      _
    $region55: #{tpu_custom_call.1} parent=1 // pred_check_branch
      %121 = sbr.rel (0) target = $region57
    $region56: #{tpu_custom_call.1} parent=1 // pred_region
      %122 = dma.done [#allocation12], 16
    $region57: #{tpu_custom_call.1} parent=1 // pred_fallthru
      _
    // Predicated region
    $region58: #{tpu_custom_call.1} parent=1 // pred_check
      _
    $region59: #{tpu_custom_call.1} parent=1 // pred_check_branch
      %124 = sbr.rel (0) target = $region61
    $region60: #{tpu_custom_call.1} parent=1 // pred_region
      %125 = dma.done [#allocation12], 2048
    $region61: #{tpu_custom_call.1} parent=1 // pred_fallthru
      _
    // Predicated region
    $region62: #{tpu_custom_call.1} parent=1 // pred_check
      _
    $region63: #{tpu_custom_call.1} parent=1 // pred_check_branch
      %127 = sbr.rel (0) target = $region65
    $region64: #{tpu_custom_call.1} parent=1 // pred_region
      %128 = dma.done [#allocation15], 16
    $region65: #{tpu_custom_call.1} parent=1 // pred_fallthru
      _
    %v129 = vld [vmem:[#allocation2] sm:$0xff]
    %v130 = vld [vmem:[#allocation2 + $0x8] sm:$0xff]
    %v131 = vld [vmem:[#allocation7] sm:$0x3]
    %v133 = vlaneseq
    %v134 = vshrl.u32 %v133, 7
    %v135 = vsub.s32 0, %v134
    %v136 = vrot.slane %v131, %v135
    %v137 = vlaneseq
    %v138 = vshrl.u32 %v137, 7
    %v139 = vsub.s32 1, %v138
    %v140 = vrot.slane %v131, %v139
    %v141 = vcombine.low %v136, %v140
    %v143 = vmul.f32 %v129, %v141
    %v144 = vmul.f32 %v130, %v141
    %v147 = vcombine.high %v143, %v143
    %v148 = vcombine.high %v144, %v144
    %vm151 = vcmask 1043456
    %v152 = vsel %vm151, %v143, 0.0
    %v153 = vsel %vm151, %v147, 0.0
    %v154 = vadd.f32 %v152, %v153
    %155 = vadd.xlane.f32.xlu0 %v154
    %v156 = vpop.xlane.xlu0 %155
    %v157 = vsel %vm151, %v144, 0.0
    %v158 = vsel %vm151, %v148, 0.0
    %v159 = vadd.f32 %v157, %v158
    %160 = vadd.xlane.f32.xlu0 %v159
    %v161 = vpop.xlane.xlu0 %160
    %v164 = vlaneseq
    %v165 = vand.u32 %v164, 127
    %v166 = vlaneseq
    %v167 = vshrl.u32 %v166, 7
    %v168 = vsub.s32 %v165, %v167
    %v169 = vrot.slane %v156, %v168
    %v170 = vlaneseq
    %v171 = vshrl.u32 %v170, 7
    %v172 = vsub.s32 %v165, %v171
    %v173 = vrot.slane %v161, %v172
    %vm174 = vcmask 1041409
    %v175 = vsel %vm174, %v173, %v169
    %vm177 = vcmask 25600
    %v178 = vsel %vm177, %v175, 0.0
    %179 = vadd.xlane.f32.xlu0 %v178
    %v180 = vpop.xlane.xlu0 %179
    %v181 = vrcp.pop 4.0
    %v182 = vmul.f32 %v180, %v181
    %v184 = vlaneseq
    %v185 = vshrl.u32 %v184, 7
    %v186 = vsub.s32 0, %v185
    %v187 = vrot.slane %v182, %v186
    %v188 = vlaneseq
    %v189 = vshrl.u32 %v188, 7
    %v190 = vsub.s32 1, %v189
    %v191 = vrot.slane %v182, %v190
    %v194 = vsub.f32 %v156, %v187
    %v195 = vsub.f32 %v161, %v191
    %v196 = vmul.f32 %v194, %v194
    %v197 = vmul.f32 %v195, %v195
    %200 = vset.pattern.permute.xlu0 0
    %201 = vperm.xlu0 %200, %v196
    %v202 = vpop.permute.xlu0 %201
    %203 = vset.pattern.permute.xlu0 0
    %204 = vperm.xlu0 %203, %v197
    %v205 = vpop.permute.xlu0 %204
    %v206 = vlaneseq
    %v207 = vshrl.u32 %v206, 7
    %v208 = vsub.s32 %v165, %v207
    %v209 = vrot.slane %v202, %v208
    %v210 = vlaneseq
    %v211 = vshrl.u32 %v210, 7
    %v212 = vsub.s32 %v165, %v211
    %v213 = vrot.slane %v205, %v212
    %v214 = vsel %vm174, %v213, %v209
    %v216 = vsel %vm177, %v214, 0.0
    %217 = vadd.xlane.f32.xlu0 %v216
    %v218 = vpop.xlane.xlu0 %217
    %v219 = vmul.f32 %v218, %v181
    %v220 = vadd.f32 %v219, 1e-05
    %v221 = vrsqrt.pop %v220
    %v223 = vlaneseq
    %v224 = vshrl.u32 %v223, 7
    %v225 = vsub.s32 0, %v224
    %v226 = vrot.slane %v221, %v225
    %v227 = vlaneseq
    %v228 = vshrl.u32 %v227, 7
    %v229 = vsub.s32 1, %v228
    %v230 = vrot.slane %v221, %v229
    %v233 = vmul.f32 %v194, %v226
    %v234 = vmul.f32 %v195, %v230
    %v235 = vld [vmem:[#allocation5] sm:$0x3f]
    %v236 = vld [vmem:[#allocation5 + $0x8] sm:$0x3f]
    %v237 = vld [vmem:[#allocation8] sm:$0x1]
    %v239 = vlaneseq
    %v240 = vshrl.u32 %v239, 7
    %v241 = vsub.s32 0, %v240
    %v242 = vrot.slane %v237, %v241
    %v244 = vmul.f32 %v235, %v242
    %v245 = vmul.f32 %v236, %v242
    %vm246 = vcmask 521216
    %v247 = vsel %vm246, %v244, 0.0
    %248 = vadd.xlane.f32.xlu0 %v247
    %v249 = vpop.xlane.xlu0 %248
    %v250 = vsel %vm246, %v245, 0.0
    %251 = vadd.xlane.f32.xlu0 %v250
    %v252 = vpop.xlane.xlu0 %251
    %v255 = vlaneseq
    %v256 = vshrl.u32 %v255, 7
    %v257 = vsub.s32 %v165, %v256
    %v258 = vrot.slane %v249, %v257
    %v259 = vlaneseq
    %v260 = vshrl.u32 %v259, 7
    %v261 = vsub.s32 %v165, %v260
    %v262 = vrot.slane %v252, %v261
    %v263 = vsel %vm174, %v262, %v258
    %vm265 = vcmask 41984
    %v266 = vsel %vm265, %v263, 0.0
    %267 = vadd.xlane.f32.xlu0 %v266
    %v268 = vpop.xlane.xlu0 %267
    %v269 = vrcp.pop 6.0
    %v270 = vmul.f32 %v268, %v269
    %v272 = vlaneseq
    %v273 = vshrl.u32 %v272, 7
    %v274 = vsub.s32 0, %v273
    %v275 = vrot.slane %v270, %v274
    %v276 = vlaneseq
    %v277 = vshrl.u32 %v276, 7
    %v278 = vsub.s32 1, %v277
    %v279 = vrot.slane %v270, %v278
    %v282 = vsub.f32 %v249, %v275
    %v283 = vsub.f32 %v252, %v279
    %v284 = vmul.f32 %v282, %v282
    %v285 = vmul.f32 %v283, %v283
    %288 = vset.pattern.permute.xlu0 0
    %289 = vperm.xlu0 %288, %v284
    %v290 = vpop.permute.xlu0 %289
    %291 = vset.pattern.permute.xlu0 0
    %292 = vperm.xlu0 %291, %v285
    %v293 = vpop.permute.xlu0 %292
    %v294 = vlaneseq
    %v295 = vshrl.u32 %v294, 7
    %v296 = vsub.s32 %v165, %v295
    %v297 = vrot.slane %v290, %v296
    %v298 = vlaneseq
    %v299 = vshrl.u32 %v298, 7
    %v300 = vsub.s32 %v165, %v299
    %v301 = vrot.slane %v293, %v300
    %v302 = vsel %vm174, %v301, %v297
    %v304 = vsel %vm265, %v302, 0.0
    %305 = vadd.xlane.f32.xlu0 %v304
    %v306 = vpop.xlane.xlu0 %305
    %v307 = vmul.f32 %v306, %v269
    %v308 = vadd.f32 %v307, 1e-05
    %v309 = vrsqrt.pop %v308
    %v311 = vlaneseq
    %v312 = vshrl.u32 %v311, 7
    %v313 = vsub.s32 0, %v312
    %v314 = vrot.slane %v309, %v313
    %v315 = vlaneseq
    %v316 = vshrl.u32 %v315, 7
    %v317 = vsub.s32 1, %v316
    %v318 = vrot.slane %v309, %v317
    %v321 = vmul.f32 %v282, %v314
    %v322 = vmul.f32 %v283, %v318
    %325 = vset.pattern.permute.xlu0 0
    %326 = vperm.xlu0 %325, %v233
    %v327 = vpop.permute.xlu0 %326
    %328 = vset.pattern.permute.xlu0 0
    %329 = vperm.xlu0 %328, %v234
    %v330 = vpop.permute.xlu0 %329
    %v331 = vlaneseq
    %v332 = vshrl.u32 %v331, 7
    %v333 = vsub.s32 %v165, %v332
    %v334 = vrot.slane %v327, %v333
    %v335 = vlaneseq
    %v336 = vshrl.u32 %v335, 7
    %v337 = vsub.s32 %v165, %v336
    %v338 = vrot.slane %v330, %v337
    %v339 = vsel %vm174, %v338, %v334
    %343 = vset.pattern.permute.xlu0 0
    %344 = vperm.xlu0 %343, %v321
    %v345 = vpop.permute.xlu0 %344
    %346 = vset.pattern.permute.xlu0 0
    %347 = vperm.xlu0 %346, %v322
    %v348 = vpop.permute.xlu0 %347
    %v349 = vadd.s32 %v165, 4294967292
    %v350 = vlaneseq
    %v351 = vshrl.u32 %v350, 7
    %v352 = vsub.s32 %v349, %v351
    %v353 = vrot.slane %v345, %v352
    %v354 = vlaneseq
    %v355 = vshrl.u32 %v354, 7
    %v356 = vsub.s32 %v349, %v355
    %v357 = vrot.slane %v348, %v356
    %v358 = vsel %vm174, %v357, %v353
    %vm360 = vcmask 31744
    %v361 = vsel %vm360, %v339, %v358
    %vm362 = vcmask 80896
    %v363 = vsel %vm362, %v361, 0.0
    %vm364 = vcmask 1041408
    %v365 = vsel %vm364, %v363, 0.0
    %v366 = vrot.slane %v365, 4
    %v367 = vadd.f32 %v365, %v366
    %v368 = vrot.slane %v367, 2
    %v369 = vadd.f32 %v367, %v368
    %v370 = vrot.slane %v369, 1
    %v371 = vadd.f32 %v369, %v370
    %v372 = vrcp.pop 2.0
    %v373 = vmul.f32 %v371, %v372
    %v374 = vsub.f32 %v363, %v373
    %v375 = vmul.f32 %v374, %v374
    %v376 = vsel %vm364, %v375, 0.0
    %v377 = vrot.slane %v376, 4
    %v378 = vadd.f32 %v376, %v377
    %v379 = vrot.slane %v378, 2
    %v380 = vadd.f32 %v378, %v379
    %v381 = vrot.slane %v380, 1
    %v382 = vadd.f32 %v380, %v381
    %v383 = vmul.f32 %v382, %v372
    %v384 = vadd.f32 %v383, 1e-05
    %v385 = vrsqrt.pop %v384
    %v386 = vmul.f32 %v374, %v385
    %v387 = vld [vmem:[#allocation10] sm:$0x1]
    %v389 = vlaneseq
    %v390 = vshrl.u32 %v389, 7
    %v391 = vsub.s32 0, %v390
    %v392 = vrot.slane %v387, %v391
    %v394 = vmul.f32 %v386, %v392
    %v395 = vld [vmem:[#allocation11] sm:$0x1]
    %v397 = vlaneseq
    %v398 = vshrl.u32 %v397, 7
    %v399 = vsub.s32 0, %v398
    %v400 = vrot.slane %v395, %v399
    %v402 = vadd.f32 %v394, %v400
    %v403 = vld [vmem:[#allocation13] sm:$0xff]
    %v404 = vld [vmem:[#allocation13 + $0x8] sm:$0xff]
    %v405 = vld [vmem:[#allocation13 + $0x10] sm:$0xff]
    %v406 = vld [vmem:[#allocation13 + $0x18] sm:$0xff]
    %v407 = vld [vmem:[#allocation13 + $0x20] sm:$0xff]
    %v408 = vld [vmem:[#allocation13 + $0x28] sm:$0xff]
    %v409 = vld [vmem:[#allocation13 + $0x30] sm:$0xff]
    %v410 = vld [vmem:[#allocation13 + $0x38] sm:$0xff]
    %v411 = vld [vmem:[#allocation13 + $0x40] sm:$0xff]
    %v412 = vld [vmem:[#allocation13 + $0x48] sm:$0xff]
    %v413 = vld [vmem:[#allocation13 + $0x50] sm:$0xff]
    %v414 = vld [vmem:[#allocation13 + $0x58] sm:$0xff]
    %v415 = vld [vmem:[#allocation13 + $0x60] sm:$0xff]
    %v416 = vld [vmem:[#allocation13 + $0x68] sm:$0xff]
    %v417 = vld [vmem:[#allocation13 + $0x70] sm:$0xff]
    %v418 = vld [vmem:[#allocation13 + $0x78] sm:$0xff]
    %v419 = vld [vmem:[#allocation14] sm:$0x1]
    %v421 = vlaneseq
    %v422 = vshrl.u32 %v421, 7
    %v423 = vsub.s32 0, %v422
    %v424 = vrot.slane %v419, %v423
    %426 = vmatprep.subr.mxu0 0.0
    %427 = vmatpush1.msra.mxu0 %v403
    %428 = vmatprep.subr.mxu0 0.0
    %429 = vmatpush1.msra.mxu0 %v404
    %430 = vmatprep.subr.mxu0 0.0
    %431 = vmatpush1.msra.mxu0 %v405
    %432 = vmatprep.subr.mxu0 0.0
    %433 = vmatpush1.msra.mxu0 %v406
    %434 = vmatprep.subr.mxu0 0.0
    %435 = vmatpush1.msra.mxu0 %v407
    %436 = vmatprep.subr.mxu0 0.0
    %437 = vmatpush1.msra.mxu0 %v408
    %438 = vmatprep.subr.mxu0 0.0
    %439 = vmatpush1.msra.mxu0 %v409
    %440 = vmatprep.subr.mxu0 0.0
    %441 = vmatpush1.msra.mxu0 %v410
    %442 = vmatprep.subr.mxu0 0.0
    %443 = vmatpush1.msra.mxu0 %v411
    %444 = vmatprep.subr.mxu0 0.0
    %445 = vmatpush1.msra.mxu0 %v412
    %446 = vmatprep.subr.mxu0 0.0
    %447 = vmatpush1.msra.mxu0 %v413
    %448 = vmatprep.subr.mxu0 0.0
    %449 = vmatpush1.msra.mxu0 %v414
    %450 = vmatprep.subr.mxu0 0.0
    %451 = vmatpush1.msra.mxu0 %v415
    %452 = vmatprep.subr.mxu0 0.0
    %453 = vmatpush1.msra.mxu0 %v416
    %454 = vmatprep.subr.mxu0 0.0
    %455 = vmatpush1.msra.mxu0 %v417
    %456 = vmatprep.subr.mxu0 0.0
    %457 = vmatpush1.msra.mxu0 %v418
    %458 = vmatprep.subr.mxu0 0.0
    %459 = vmatpush1.msra.mxu0 0.0
    %460 = vmatprep.subr.mxu0 0.0
    %461 = vmatpush1.msra.mxu0 0.0
    %462 = vmatprep.subr.mxu0 0.0
    %463 = vmatpush1.msra.mxu0 0.0
    %464 = vmatprep.subr.mxu0 0.0
    %465 = vmatpush1.msra.mxu0 0.0
    %466 = vmatprep.subr.mxu0 0.0
    %467 = vmatpush1.msra.mxu0 0.0
    %468 = vmatprep.subr.mxu0 0.0
    %469 = vmatpush1.msra.mxu0 0.0
    %470 = vmatprep.subr.mxu0 0.0
    %471 = vmatpush1.msra.mxu0 0.0
    %472 = vmatprep.subr.mxu0 0.0
    %473 = vmatpush1.msra.mxu0 0.0
    %474 = vmatprep.subr.mxu0 0.0
    %475 = vmatpush1.msra.mxu0 0.0
    %476 = vmatprep.subr.mxu0 0.0
    %477 = vmatpush1.msra.mxu0 0.0
    %478 = vmatprep.subr.mxu0 0.0
    %479 = vmatpush1.msra.mxu0 0.0
    %480 = vmatprep.subr.mxu0 0.0
    %481 = vmatpush1.msra.mxu0 0.0
    %482 = vmatprep.subr.mxu0 0.0
    %483 = vmatpush1.msra.mxu0 0.0
    %484 = vmatprep.subr.mxu0 0.0
    %485 = vmatpush1.msra.mxu0 0.0
    %486 = vmatprep.subr.mxu0 0.0
    %487 = vmatpush1.msra.mxu0 0.0
    %488 = vmatprep.subr.mxu0 0.0
    %489 = vmatpush1.msra.mxu0 0.0
    %490 = vmatprep.mubr.f32.mxu0 0.0
    %491 = vmatmul.mubr.f32.gmra.mrb[0].mxu0 %v402
    %v492 = vpop.f32.mrb[0].mxu0
    %v493 = vadd.f32 %v424, %v492
    %v494 = vpop.f32.mrb[0].mxu0
    %495 = vdwg.mxu0
    %496 = vst [vmem:[#allocation16] sm:$0x3] %v493
    // Predicated region
    $region66: #{tpu_custom_call.1} parent=1 // pred_check
      _
    $region67: #{tpu_custom_call.1} parent=1 // pred_check_branch
      %498 = sbr.rel (0) target = $region69
    $region68: #{tpu_custom_call.1} parent=1 // pred_region
      %s500 = ssub.s32 32, 32
      %501 = vsyncadd [#allocation4], %s500
      %s503 = sshll.u32 [#allocation16], 4
      %s504 = int_to_ptr.vmem [resolvable:$true] %s503
      %506 = dma.vmem_to_hbm [thread:$0]  %s504, 32, %s8, [#allocation4]
    $region69: #{tpu_custom_call.1} parent=1 // pred_fallthru
      _
    // Predicated region
    $region70: #{tpu_custom_call.1} parent=1 // pred_check
      _
    $region71: #{tpu_custom_call.1} parent=1 // pred_check_branch
      %508 = sbr.rel (0) target = $region73
    $region72: #{tpu_custom_call.1} parent=1 // pred_region
      %509 = dma.done [#allocation4], 32
    $region73: #{tpu_custom_call.1} parent=1 // pred_fallthru
      _
    %510 = vsyncpa [#allocation3], 1
    %511 = vsyncpa [#allocation6], 1
    %512 = vsyncpa [#allocation9], 1
    %513 = vsyncpa [#allocation12], 1
    %514 = vsyncpa [#allocation15], 1
    %515 = vsyncpa [#allocation4], 1

</llo_original>
